<compile_context>
chip_gen: v5e
topology: v5e:2x2
jax: 0.10.0
libtpu: 0.0.40
codegen_flags: <defaults>
</compile_context>

<pallas_src>
import functools

import jax
import jax.numpy as jnp
import numpy as np
from jax.experimental import pallas as pl
from jax.experimental.pallas import tpu as pltpu


def _maxmargin_kernel(y_pred_ref, y_true_ref, perms_ref, out_ref, *,
                      sim_margin, sim_neg):
    yt = y_true_ref[...].astype(jnp.float32)      # (B, D)
    yp = y_pred_ref[...].astype(jnp.float32)      # (B, D)
    p3 = perms_ref[...]                           # (S, 1, B) int32

    batch = yt.shape[0]
    eps = jnp.float32(1e-12)

    # --- grid-invariant scalars (computed once) -----------------------------
    ss_t = jnp.sum(yt * yt)
    ss_p = jnp.sum(yp * yp)
    inv_a = jax.lax.rsqrt(jnp.maximum(ss_t, eps))   # == inv_c for every perm
    inv_b = jax.lax.rsqrt(jnp.maximum(ss_p, eps))

    # minimize = sum(l2n(y_true) * l2n(y_pred)); identical for every sample.
    minimize = inv_a * inv_b * jnp.sum(yt * yp)

    # --- Gram matrix on the MXU: G[b, c] = <y_true[b], y_true[c]> -----------
    # Full-f32 precision so the MXU path matches the VPU reference to <1e-4.
    g = jax.lax.dot_general(
        yt, yt, (((1,), (1,)), ((), ())),
        preferred_element_type=jnp.float32,
        precision=jax.lax.Precision.HIGHEST)        # (B, B), symmetric

    # --- maximize_i = inv_a^2 * sum_b G[b, perm_i[b]], all i at once --------
    # cidx[s, c, b] = c; sel[s, c, b] = (perm_s[b] == c) ? g[c, b] : 0.
    # Summing over (c, b) and using G's symmetry picks exactly
    # sum_b <y_true[b], y_true[perm_s[b]]>.
    cidx = jax.lax.broadcasted_iota(jnp.int32, (sim_neg, batch, batch), 1)
    sel = jnp.where(p3 == cidx, g[None, :, :], jnp.float32(0.0))    # (S, B, B)
    per_i = jnp.sum(jnp.sum(sel, axis=2), axis=1, keepdims=True)    # (S, 1)
    maximize = (inv_a * inv_a) * per_i

    # --- hinge + mean --------------------------------------------------------
    mg = jnp.float32(sim_margin) - minimize + maximize              # (S, 1)
    cost = jnp.sum(jnp.maximum(mg, jnp.float32(0.0)))
    out_ref[0, 0] = cost / jnp.float32(sim_neg)


def max_margin_loss(y_pred, y_true, perms, sim_margin=1.0):
    """Pallas implementation of MaxMargin_Loss.forward.

    y_pred, y_true : (batch, feat) float32
    perms          : (sim_neg, batch) int32 -- one random permutation per
                     negative sample (replaces torch.randperm).
    """
    sim_neg, batch = perms.shape
    assert y_true.shape[0] == batch and y_pred.shape == y_true.shape

    # Only the integer permutation indices are shipped to the kernel; the
    # sim_neg permuted copies of y_true are never materialized in HBM.
    perms3 = perms.astype(jnp.int32)[:, None, :]   # (S, 1, B)

    kernel = functools.partial(_maxmargin_kernel,
                               sim_margin=float(sim_margin),
                               sim_neg=int(sim_neg))

    out = pl.pallas_call(
        kernel,
        out_shape=jax.ShapeDtypeStruct((1, 1), jnp.float32),
        in_specs=[
            pl.BlockSpec(memory_space=pltpu.VMEM),   # y_pred (B, D)
            pl.BlockSpec(memory_space=pltpu.VMEM),   # y_true (B, D)
            pl.BlockSpec(memory_space=pltpu.VMEM),   # perms  (S, 1, B)
        ],
        out_specs=pl.BlockSpec(memory_space=pltpu.SMEM),
    )(y_pred, y_true, perms3)
    return out[0, 0]


def _reference_loss(y_pred, y_true, perms, sim_margin=1.0):
    """Pure-JAX reference mirroring the PyTorch module."""
    def l2n(x):
        ss = jnp.sum(jnp.square(x))
        return x * jax.lax.rsqrt(jnp.maximum(ss, 1e-12))

    cost = 0.0
    for i in range(perms.shape[0]):
        new_true = y_true[perms[i]]
        na, nb, nc = l2n(y_true), l2n(y_pred), l2n(new_true)
        minimize = jnp.sum(na * nb)
        maximize = jnp.sum(na * nc)
        mg = sim_margin - minimize + maximize
        cost = cost + jnp.maximum(mg, 0.0)
    return cost / perms.shape[0]


if __name__ == "__main__":
    # Shapes match the module defaults: batch_size=32, sim_neg=25.
    batch, feat, sim_neg, sim_margin = 32, 64, 25, 1.0

    key = jax.random.PRNGKey(0)
    k1, k2, k3 = jax.random.split(key, 3)
    y_pred = jax.random.normal(k1, (batch, feat), dtype=jnp.float32)
    y_true = jax.random.normal(k2, (batch, feat), dtype=jnp.float32)

    # TODO(synk): torch.randperm's per-forward device RNG has no in-kernel
    # equivalent; permutations are drawn with jax.random in the wrapper.
    perm_keys = jax.random.split(k3, sim_neg)
    perms = jnp.stack(
        [jax.random.permutation(k, batch) for k in perm_keys]
    ).astype(jnp.int32)

    loss = max_margin_loss(y_pred, y_true, perms, sim_margin=sim_margin)
    loss = jax.block_until_ready(loss)

    ref = _reference_loss(y_pred, y_true, perms, sim_margin=sim_margin)
    np.testing.assert_allclose(np.asarray(loss), np.asarray(ref),
                               rtol=1e-4, atol=1e-4)
    print("KERNEL_OK")
</pallas_src>

<mosaic_0001>
module attributes {stable_mosaic.version = 11 : i64} {
  func.func @_maxmargin_kernel(%arg0: memref<32x64xf32, #tpu.memory_space<vmem>>, %arg1: memref<32x64xf32, #tpu.memory_space<vmem>>, %arg2: memref<25x1x32xi32, #tpu.memory_space<vmem>>, %arg3: memref<1x1xf32, #tpu.memory_space<smem>>) attributes {dimension_semantics = [], scalar_prefetch = 0 : i64, scratch_operands = 0 : i64, tpu.core_type = #tpu.core_type<tc>} {
    %c0 = arith.constant 0 : index
    %c0_0 = arith.constant 0 : index
    %0 = vector.load %arg1[%c0, %c0_0] : memref<32x64xf32, #tpu.memory_space<vmem>>, vector<32x64xf32>
    %c0_1 = arith.constant 0 : index
    %c0_2 = arith.constant 0 : index
    %1 = vector.load %arg0[%c0_1, %c0_2] : memref<32x64xf32, #tpu.memory_space<vmem>>, vector<32x64xf32>
    %c0_3 = arith.constant 0 : index
    %c0_4 = arith.constant 0 : index
    %c0_5 = arith.constant 0 : index
    %2 = vector.load %arg2[%c0_3, %c0_4, %c0_5] : memref<25x1x32xi32, #tpu.memory_space<vmem>>, vector<25x1x32xi32>
    %3 = arith.mulf %0, %0 : vector<32x64xf32>
    %4 = vector.shape_cast %3 : vector<32x64xf32> to vector<1x32x64xf32>
    %cst = arith.constant dense<0.000000e+00> : vector<1xf32>
    %5 = vector.multi_reduction <add>, %4, %cst [1, 2] : vector<1x32x64xf32> to vector<1xf32>
    %6 = vector.shape_cast %5 : vector<1xf32> to vector<1x1x1xf32>
    %7 = vector.extract %6[0, 0, 0] : f32 from vector<1x1x1xf32>
    %8 = arith.mulf %1, %1 : vector<32x64xf32>
    %9 = vector.shape_cast %8 : vector<32x64xf32> to vector<1x32x64xf32>
    %cst_6 = arith.constant dense<0.000000e+00> : vector<1xf32>
    %10 = vector.multi_reduction <add>, %9, %cst_6 [1, 2] : vector<1x32x64xf32> to vector<1xf32>
    %11 = vector.shape_cast %10 : vector<1xf32> to vector<1x1x1xf32>
    %12 = vector.extract %11[0, 0, 0] : f32 from vector<1x1x1xf32>
    %cst_7 = arith.constant 9.99999996E-13 : f32
    %13 = arith.maximumf %7, %cst_7 : f32
    %14 = math.rsqrt %13 : f32
    %cst_8 = arith.constant 9.99999996E-13 : f32
    %15 = arith.maximumf %12, %cst_8 : f32
    %16 = math.rsqrt %15 : f32
    %17 = arith.mulf %14, %16 : f32
    %18 = arith.mulf %0, %1 : vector<32x64xf32>
    %19 = vector.shape_cast %18 : vector<32x64xf32> to vector<1x32x64xf32>
    %cst_9 = arith.constant dense<0.000000e+00> : vector<1xf32>
    %20 = vector.multi_reduction <add>, %19, %cst_9 [1, 2] : vector<1x32x64xf32> to vector<1xf32>
    %21 = vector.shape_cast %20 : vector<1xf32> to vector<1x1x1xf32>
    %22 = vector.extract %21[0, 0, 0] : f32 from vector<1x1x1xf32>
    %23 = arith.mulf %17, %22 : f32
    %cst_10 = arith.constant dense<0.000000e+00> : vector<32x32xf32>
    %24 = tpu.matmul %0, %0, %cst_10 {dimension_numbers = #tpu.dot_dimension_numbers<[1], [1], [0], [0], [0, 0, 1, 0], [], []>, precision = #tpu.contract_precision<fp32>} : vector<32x64xf32>, vector<32x64xf32>, vector<32x32xf32> -> vector<32x32xf32>
    %25 = tpu.iota {dimensions = array<i32: 1>} : vector<25x32x32xi32>
    %26 = vector.broadcast %2 : vector<25x1x32xi32> to vector<25x32x32xi32>
    %27 = arith.cmpi eq, %26, %25 : vector<25x32x32xi32>
    %28 = vector.shape_cast %24 : vector<32x32xf32> to vector<1x32x32xf32>
    %cst_11 = arith.constant 0.000000e+00 : f32
    %29 = vector.shape_cast %28 : vector<1x32x32xf32> to vector<1x32x32xf32>
    %30 = vector.broadcast %29 : vector<1x32x32xf32> to vector<25x32x32xf32>
    %31 = vector.broadcast %cst_11 : f32 to vector<25x32x32xf32>
    %32 = arith.select %27, %30, %31 : vector<25x32x32xi1>, vector<25x32x32xf32>
    %cst_12 = arith.constant dense<0.000000e+00> : vector<25x32xf32>
    %33 = vector.multi_reduction <add>, %32, %cst_12 [2] : vector<25x32x32xf32> to vector<25x32xf32>
    %cst_13 = arith.constant dense<0.000000e+00> : vector<25xf32>
    %34 = vector.multi_reduction <add>, %33, %cst_13 [1] : vector<25x32xf32> to vector<25xf32>
    %35 = vector.shape_cast %34 : vector<25xf32> to vector<25x1xf32>
    %36 = arith.mulf %14, %14 : f32
    %37 = vector.broadcast %36 : f32 to vector<25x1xf32>
    %38 = arith.mulf %37, %35 : vector<25x1xf32>
    %cst_14 = arith.constant 1.000000e+00 : f32
    %39 = arith.subf %cst_14, %23 : f32
    %40 = vector.broadcast %39 : f32 to vector<25x1xf32>
    %41 = arith.addf %40, %38 : vector<25x1xf32>
    %cst_15 = arith.constant 0.000000e+00 : f32
    %42 = vector.broadcast %cst_15 : f32 to vector<25x1xf32>
    %43 = arith.maximumf %41, %42 : vector<25x1xf32>
    %44 = vector.shape_cast %43 : vector<25x1xf32> to vector<1x25x1xf32>
    %cst_16 = arith.constant dense<0.000000e+00> : vector<1xf32>
    %45 = vector.multi_reduction <add>, %44, %cst_16 [1, 2] : vector<1x25x1xf32> to vector<1xf32>
    %46 = vector.shape_cast %45 : vector<1xf32> to vector<1x1x1xf32>
    %47 = vector.extract %46[0, 0, 0] : f32 from vector<1x1x1xf32>
    %cst_17 = arith.constant 2.500000e+01 : f32
    %48 = arith.divf %47, %cst_17 : f32
    %c0_18 = arith.constant 0 : index
    %c0_19 = arith.constant 0 : index
    %49 = memref.load %arg3[%c0_18, %c0_19] : memref<1x1xf32, #tpu.memory_space<smem>>
    memref.store %48, %arg3[%c0_18, %c0_19] : memref<1x1xf32, #tpu.memory_space<smem>>
    return
  }
}

</mosaic_0001>

<llo_original>
// kernel: tpu_custom_call.1
$region0: #{tpu_custom_call.1}
  #allocation0 [shape = 'u32[]', space=smem, size = 0x4, offset = 0x4, fixed_abs, tag = 'smem constant byte address 0x4 - core index']
  #allocation1 [shape = 'u32[72,128]{1,0:T(1,128)}', space=vmem, size = 0x9000, scoped, tag = 'internal scratch']
  %s0 = inlined_call_operand.hbm [shape: f32[32,64], index: 0, kind: input, shape index: {}]
  %s1 = inlined_call_operand.hbm [shape: f32[32,64], index: 1, kind: input, shape index: {}]
  %s2 = inlined_call_operand.hbm [shape: s32[25,1,32], index: 2, kind: input, shape index: {}]
  %s3 = inlined_call_operand.hbm [shape: f32[1,1], index: 3, kind: output, shape index: {}]
  %s4 = sld [smem:[#allocation0]]
  $region34: #{tpu_custom_call.1} parent=0
    _
  %s6 = ssub.s32 1, %s4
  %s7 = scalar_select 0, %s6, %s4
  $region1: #{tpu_custom_call.1} parent=0
    #allocation2 [shape = 'u8[16384]{0}', space=vmem, size = 0x4000, scoped, tag = 'input window, operand 0, single buffered']
    #allocation3 [shape = 's32[1]{0}', space=sflag, size = 0x4, scoped, tag = 'scoped memory for tpu_custom_call.1']
    #allocation4 [shape = 's32[1]{0}', space=sflag, size = 0x4, scoped, tag = 'scoped memory for tpu_custom_call.1']
    #allocation5 [shape = 'u8[16384]{0}', space=vmem, size = 0x4000, scoped, tag = 'input window, operand 1, single buffered']
    #allocation6 [shape = 's32[1]{0}', space=sflag, size = 0x4, scoped, tag = 'scoped memory for tpu_custom_call.1']
    #allocation7 [shape = 'u8[12800]{0}', space=vmem, size = 0x3400, scoped, tag = 'input window, operand 2, single buffered']
    #allocation8 [shape = 'u8[512]{0}', space=smem, size = 0x200, scoped, tag = 'output window, operand 0, single buffered']
    %8 = vsyncpa [#allocation3], 0
    %9 = vsyncpa [#allocation6], 0
    %10 = vsyncpa [#allocation4], 0
    // Predicated region
    $region2: #{tpu_custom_call.1} parent=1 // pred_check
      _
    $region3: #{tpu_custom_call.1} parent=1 // pred_check_branch
      %12 = sbr.rel (0) target = $region5
    $region4: #{tpu_custom_call.1} parent=1 // pred_region
      %14 = vsyncadd [#allocation3], 0
      %s15 = sshll.u32 %s0, 4
      %s16 = int_to_ptr.hbm [resolvable:$true] %s15
      %s17 = sshll.u32 [#allocation2], 4
      %s18 = int_to_ptr.vmem [resolvable:$true] %s17
      %23 = dma.hbm_to_vmem [thread:$0]  %s16, 512, %s18, [#allocation3], 128, 128, 8
    $region5: #{tpu_custom_call.1} parent=1 // pred_fallthru
      _
    // Predicated region
    $region6: #{tpu_custom_call.1} parent=1 // pred_check
      _
    $region7: #{tpu_custom_call.1} parent=1 // pred_check_branch
      %25 = sbr.rel (0) target = $region9
    $region8: #{tpu_custom_call.1} parent=1 // pred_region
      %27 = vsyncadd [#allocation6], 0
      %s28 = sshll.u32 %s1, 4
      %s29 = int_to_ptr.hbm [resolvable:$true] %s28
      %s30 = sshll.u32 [#allocation5], 4
      %s31 = int_to_ptr.vmem [resolvable:$true] %s30
      %36 = dma.hbm_to_vmem [thread:$0]  %s29, 512, %s31, [#allocation6], 128, 128, 8
    $region9: #{tpu_custom_call.1} parent=1 // pred_fallthru
      _
    // Predicated region
    $region10: #{tpu_custom_call.1} parent=1 // pred_check
      _
    $region11: #{tpu_custom_call.1} parent=1 // pred_check_branch
      %38 = sbr.rel (0) target = $region13
    $region12: #{tpu_custom_call.1} parent=1 // pred_region
      %40 = vsyncadd [#allocation6], 0
      %s41 = sshll.u32 %s2, 4
      %s42 = int_to_ptr.hbm [resolvable:$true] %s41
      %s43 = sshll.u32 [#allocation7], 4
      %s44 = int_to_ptr.vmem [resolvable:$true] %s43
      %49 = dma.hbm_to_vmem [thread:$0]  %s42, 400, %s44, [#allocation6], 16, 16, 1
    $region13: #{tpu_custom_call.1} parent=1 // pred_fallthru
      _
    // Predicated region
    $region14: #{tpu_custom_call.1} parent=1 // pred_check
      _
    $region15: #{tpu_custom_call.1} parent=1 // pred_check_branch
      %51 = sbr.rel (0) target = $region17
    $region16: #{tpu_custom_call.1} parent=1 // pred_region
      %53 = dma.done [#allocation3], 512
    $region17: #{tpu_custom_call.1} parent=1 // pred_fallthru
      _
    // Predicated region
    $region18: #{tpu_custom_call.1} parent=1 // pred_check
      _
    $region19: #{tpu_custom_call.1} parent=1 // pred_check_branch
      %55 = sbr.rel (0) target = $region21
    $region20: #{tpu_custom_call.1} parent=1 // pred_region
      %57 = dma.done [#allocation6], 512
    $region21: #{tpu_custom_call.1} parent=1 // pred_fallthru
      _
    // Predicated region
    $region22: #{tpu_custom_call.1} parent=1 // pred_check
      _
    $region23: #{tpu_custom_call.1} parent=1 // pred_check_branch
      %59 = sbr.rel (0) target = $region25
    $region24: #{tpu_custom_call.1} parent=1 // pred_region
      %61 = dma.done [#allocation6], 400
    $region25: #{tpu_custom_call.1} parent=1 // pred_fallthru
      _
    %v62 = vld [vmem:[#allocation5] sm:$0xff]
    %v63 = vld [vmem:[#allocation5 + $0x8] sm:$0xff]
    %v64 = vld [vmem:[#allocation5 + $0x10] sm:$0xff]
    %v65 = vld [vmem:[#allocation5 + $0x18] sm:$0xff]
    %v66 = vld [vmem:[#allocation2] sm:$0xff]
    %v67 = vld [vmem:[#allocation2 + $0x8] sm:$0xff]
    %v68 = vld [vmem:[#allocation2 + $0x10] sm:$0xff]
    %v69 = vld [vmem:[#allocation2 + $0x18] sm:$0xff]
    %v70 = vld [vmem:[#allocation7] sm:$0x1]
    %v71 = vld [vmem:[#allocation7 + $0x1] sm:$0x1]
    %v72 = vld [vmem:[#allocation7 + $0x2] sm:$0x1]
    %v73 = vld [vmem:[#allocation7 + $0x3] sm:$0x1]
    %v74 = vld [vmem:[#allocation7 + $0x4] sm:$0x1]
    %v75 = vld [vmem:[#allocation7 + $0x5] sm:$0x1]
    %v76 = vld [vmem:[#allocation7 + $0x6] sm:$0x1]
    %v77 = vld [vmem:[#allocation7 + $0x7] sm:$0x1]
    %v78 = vld [vmem:[#allocation7 + $0x8] sm:$0x1]
    %v79 = vld [vmem:[#allocation7 + $0x9] sm:$0x1]
    %v80 = vld [vmem:[#allocation7 + $0xa] sm:$0x1]
    %v81 = vld [vmem:[#allocation7 + $0xb] sm:$0x1]
    %v82 = vld [vmem:[#allocation7 + $0xc] sm:$0x1]
    %v83 = vld [vmem:[#allocation7 + $0xd] sm:$0x1]
    %v84 = vld [vmem:[#allocation7 + $0xe] sm:$0x1]
    %v85 = vld [vmem:[#allocation7 + $0xf] sm:$0x1]
    %v86 = vld [vmem:[#allocation7 + $0x10] sm:$0x1]
    %v87 = vld [vmem:[#allocation7 + $0x11] sm:$0x1]
    %v88 = vld [vmem:[#allocation7 + $0x12] sm:$0x1]
    %v89 = vld [vmem:[#allocation7 + $0x13] sm:$0x1]
    %v90 = vld [vmem:[#allocation7 + $0x14] sm:$0x1]
    %v91 = vld [vmem:[#allocation7 + $0x15] sm:$0x1]
    %v92 = vld [vmem:[#allocation7 + $0x16] sm:$0x1]
    %v93 = vld [vmem:[#allocation7 + $0x17] sm:$0x1]
    %v94 = vld [vmem:[#allocation7 + $0x18] sm:$0x1]
    %v95 = vmul.f32 %v62, %v62
    %v96 = vmul.f32 %v63, %v63
    %v97 = vmul.f32 %v64, %v64
    %v98 = vmul.f32 %v65, %v65
    %vm99 = vcmask 523264
    %v100 = vsel %vm99, %v95, 0.0
    %v101 = vsel %vm99, %v96, 0.0
    %v102 = vadd.f32 %v100, %v101
    %v103 = vsel %vm99, %v97, 0.0
    %v104 = vadd.f32 %v102, %v103
    %v105 = vsel %vm99, %v98, 0.0
    %v106 = vadd.f32 %v104, %v105
    %107 = vadd.xlane.f32.xlu0 %v106
    %v108 = vpop.xlane.xlu0 %107
    %v109 = vrot.slane %v108, 4
    %v110 = vadd.f32 %v108, %v109
    %v111 = vrot.slane %v110, 2
    %v112 = vadd.f32 %v110, %v111
    %v113 = vrot.slane %v112, 1
    %v114 = vadd.f32 %v112, %v113
    %s115 = vtos %v114
    %v116 = vmul.f32 %v66, %v66
    %v117 = vmul.f32 %v67, %v67
    %v118 = vmul.f32 %v68, %v68
    %v119 = vmul.f32 %v69, %v69
    %v120 = vsel %vm99, %v116, 0.0
    %v121 = vsel %vm99, %v117, 0.0
    %v122 = vadd.f32 %v120, %v121
    %v123 = vsel %vm99, %v118, 0.0
    %v124 = vadd.f32 %v122, %v123
    %v125 = vsel %vm99, %v119, 0.0
    %v126 = vadd.f32 %v124, %v125
    %127 = vadd.xlane.f32.xlu0 %v126
    %v128 = vpop.xlane.xlu0 %127
    %v129 = vrot.slane %v128, 4
    %v130 = vadd.f32 %v128, %v129
    %v131 = vrot.slane %v130, 2
    %v132 = vadd.f32 %v130, %v131
    %v133 = vrot.slane %v132, 1
    %v134 = vadd.f32 %v132, %v133
    %s135 = vtos %v134
    %s136 = smax.f32 %s115, 1e-12
    %v137 = vstv %s136
    %v138 = vrsqrt.pop %v137
    %v139 = vmul.f32 %v138, %v137
    %v140 = vmul.f32 %v139, %v138
    %v141 = vmul.f32 0.5, %v140
    %v142 = vsub.f32 1.5, %v141
    %v143 = vmul.f32 %v138, %v142
    %vm144 = vweird.f32 %v137
    %vm145 = vweird.f32 %v138
    %vm146 = vmor %vm144, %vm145
    %v147 = vsel %vm146, %v138, %v143
    %s148 = vtos %v147
    %s149 = smax.f32 %s135, 1e-12
    %v150 = vstv %s149
    %v151 = vrsqrt.pop %v150
    %v152 = vmul.f32 %v151, %v150
    %v153 = vmul.f32 %v152, %v151
    %v154 = vmul.f32 0.5, %v153
    %v155 = vsub.f32 1.5, %v154
    %v156 = vmul.f32 %v151, %v155
    %vm157 = vweird.f32 %v150
    %vm158 = vweird.f32 %v151
    %vm159 = vmor %vm157, %vm158
    %v160 = vsel %vm159, %v151, %v156
    %s161 = vtos %v160
    %s162 = smul.f32 %s148, %s161
    %v163 = vmul.f32 %v62, %v66
    %v164 = vmul.f32 %v63, %v67
    %v165 = vmul.f32 %v64, %v68
    %v166 = vmul.f32 %v65, %v69
    %v167 = vsel %vm99, %v163, 0.0
    %v168 = vsel %vm99, %v164, 0.0
    %v169 = vadd.f32 %v167, %v168
    %v170 = vsel %vm99, %v165, 0.0
    %v171 = vadd.f32 %v169, %v170
    %v172 = vsel %vm99, %v166, 0.0
    %v173 = vadd.f32 %v171, %v172
    %174 = vadd.xlane.f32.xlu0 %v173
    %v175 = vpop.xlane.xlu0 %174
    %v176 = vrot.slane %v175, 4
    %v177 = vadd.f32 %v175, %v176
    %v178 = vrot.slane %v177, 2
    %v179 = vadd.f32 %v177, %v178
    %v180 = vrot.slane %v179, 1
    %v181 = vadd.f32 %v179, %v180
    %s182 = vtos %v181
    %s183 = smul.f32 %s162, %s182
    %v185 = vsel %vm99, %v62, 0
    %v188 = vsel %vm99, %v63, 0
    %v191 = vsel %vm99, %v64, 0
    %v194 = vsel %vm99, %v65, 0
    %196 = vmatpush.xpose.msra.mxu0 0.0
    %197 = vmatpush.xpose.msra.mxu0 0.0
    %198 = vmatpush.xpose.msra.mxu0 0.0
    %199 = vmatpush.xpose.msra.mxu0 0.0
    %200 = vmatpush.xpose.msra.mxu0 0.0
    %201 = vmatpush.xpose.msra.mxu0 0.0
    %202 = vmatpush.xpose.msra.mxu0 0.0
    %203 = vmatpush.xpose.msra.mxu0 0.0
    %204 = vmatpush.xpose.msra.mxu0 0.0
    %205 = vmatpush.xpose.msra.mxu0 0.0
    %206 = vmatpush.xpose.msra.mxu0 0.0
    %207 = vmatpush.xpose.msra.mxu0 0.0
    %v208 = vand.u32 %v194, 4294901760
    %209 = vmatpush.xpose.msra.mxu0 %v208
    %v210 = vand.u32 %v191, 4294901760
    %211 = vmatpush.xpose.msra.mxu0 %v210
    %v212 = vand.u32 %v188, 4294901760
    %213 = vmatpush.xpose.msra.mxu0 %v212
    %v214 = vand.u32 %v185, 4294901760
    %215 = vmatpush.xpose.msra.mxu0 %v214
    %v216 = vand.u32 %v185, 4294901760
    %v217 = vsub.f32 %v185, %v216
    %v218 = vand.u32 %v217, 4294901760
    %v219 = vsub.f32 %v217, %v218
    %v220 = vand.u32 %v219, 4294901760
    %221 = vmatmul.f32.gmra.mxu0 %v220
    %v222 = vpop.f32.mrf.mxu0
    %v223 = vadd.f32 0.0, %v222
    %v224 = vand.u32 %v188, 4294901760
    %v225 = vsub.f32 %v188, %v224
    %v226 = vand.u32 %v225, 4294901760
    %v227 = vsub.f32 %v225, %v226
    %v228 = vand.u32 %v227, 4294901760
    %229 = vmatmul.f32.gmra.mxu0 %v228
    %v230 = vpop.f32.mrf.mxu0
    %v231 = vadd.f32 0.0, %v230
    %v232 = vand.u32 %v191, 4294901760
    %v233 = vsub.f32 %v191, %v232
    %v234 = vand.u32 %v233, 4294901760
    %v235 = vsub.f32 %v233, %v234
    %v236 = vand.u32 %v235, 4294901760
    %237 = vmatmul.f32.gmra.mxu0 %v236
    %v238 = vpop.f32.mrf.mxu0
    %v239 = vadd.f32 0.0, %v238
    %v240 = vand.u32 %v194, 4294901760
    %v241 = vsub.f32 %v194, %v240
    %v242 = vand.u32 %v241, 4294901760
    %v243 = vsub.f32 %v241, %v242
    %v244 = vand.u32 %v243, 4294901760
    %245 = vmatmul.f32.gmra.mxu0 %v244
    %v246 = vpop.f32.mrf.mxu0
    %v247 = vadd.f32 0.0, %v246
    %248 = vdwg.mxu0
    %249 = vmatpush.xpose.msra.mxu0 0.0
    %250 = vmatpush.xpose.msra.mxu0 0.0
    %251 = vmatpush.xpose.msra.mxu0 0.0
    %252 = vmatpush.xpose.msra.mxu0 0.0
    %253 = vmatpush.xpose.msra.mxu0 0.0
    %254 = vmatpush.xpose.msra.mxu0 0.0
    %255 = vmatpush.xpose.msra.mxu0 0.0
    %256 = vmatpush.xpose.msra.mxu0 0.0
    %257 = vmatpush.xpose.msra.mxu0 0.0
    %258 = vmatpush.xpose.msra.mxu0 0.0
    %259 = vmatpush.xpose.msra.mxu0 0.0
    %260 = vmatpush.xpose.msra.mxu0 0.0
    %v261 = vand.u32 %v194, 4294901760
    %v262 = vsub.f32 %v194, %v261
    %v263 = vand.u32 %v262, 4294901760
    %v264 = vsub.f32 %v262, %v263
    %v265 = vand.u32 %v264, 4294901760
    %266 = vmatpush.xpose.msra.mxu0 %v265
    %v267 = vand.u32 %v191, 4294901760
    %v268 = vsub.f32 %v191, %v267
    %v269 = vand.u32 %v268, 4294901760
    %v270 = vsub.f32 %v268, %v269
    %v271 = vand.u32 %v270, 4294901760
    %272 = vmatpush.xpose.msra.mxu0 %v271
    %v273 = vand.u32 %v188, 4294901760
    %v274 = vsub.f32 %v188, %v273
    %v275 = vand.u32 %v274, 4294901760
    %v276 = vsub.f32 %v274, %v275
    %v277 = vand.u32 %v276, 4294901760
    %278 = vmatpush.xpose.msra.mxu0 %v277
    %v279 = vand.u32 %v185, 4294901760
    %v280 = vsub.f32 %v185, %v279
    %v281 = vand.u32 %v280, 4294901760
    %v282 = vsub.f32 %v280, %v281
    %v283 = vand.u32 %v282, 4294901760
    %284 = vmatpush.xpose.msra.mxu0 %v283
    %v285 = vand.u32 %v185, 4294901760
    %286 = vmatmul.f32.gmra.mxu0 %v285
    %v287 = vpop.f32.mrf.mxu0
    %v288 = vadd.f32 %v223, %v287
    %v289 = vand.u32 %v188, 4294901760
    %290 = vmatmul.f32.gmra.mxu0 %v289
    %v291 = vpop.f32.mrf.mxu0
    %v292 = vadd.f32 %v231, %v291
    %v293 = vand.u32 %v191, 4294901760
    %294 = vmatmul.f32.gmra.mxu0 %v293
    %v295 = vpop.f32.mrf.mxu0
    %v296 = vadd.f32 %v239, %v295
    %v297 = vand.u32 %v194, 4294901760
    %298 = vmatmul.f32.gmra.mxu0 %v297
    %v299 = vpop.f32.mrf.mxu0
    %v300 = vadd.f32 %v247, %v299
    %301 = vdwg.mxu0
    %302 = vmatpush.xpose.msra.mxu0 0.0
    %303 = vmatpush.xpose.msra.mxu0 0.0
    %304 = vmatpush.xpose.msra.mxu0 0.0
    %305 = vmatpush.xpose.msra.mxu0 0.0
    %306 = vmatpush.xpose.msra.mxu0 0.0
    %307 = vmatpush.xpose.msra.mxu0 0.0
    %308 = vmatpush.xpose.msra.mxu0 0.0
    %309 = vmatpush.xpose.msra.mxu0 0.0
    %310 = vmatpush.xpose.msra.mxu0 0.0
    %311 = vmatpush.xpose.msra.mxu0 0.0
    %312 = vmatpush.xpose.msra.mxu0 0.0
    %313 = vmatpush.xpose.msra.mxu0 0.0
    %v314 = vand.u32 %v194, 4294901760
    %v315 = vsub.f32 %v194, %v314
    %316 = vmatpush.xpose.msra.mxu0 %v315
    %v317 = vand.u32 %v191, 4294901760
    %v318 = vsub.f32 %v191, %v317
    %319 = vmatpush.xpose.msra.mxu0 %v318
    %v320 = vand.u32 %v188, 4294901760
    %v321 = vsub.f32 %v188, %v320
    %322 = vmatpush.xpose.msra.mxu0 %v321
    %v323 = vand.u32 %v185, 4294901760
    %v324 = vsub.f32 %v185, %v323
    %325 = vmatpush.xpose.msra.mxu0 %v324
    %v326 = vand.u32 %v185, 4294901760
    %v327 = vsub.f32 %v185, %v326
    %328 = vmatmul.f32.gmra.mxu0 %v327
    %v329 = vpop.f32.mrf.mxu0
    %v330 = vadd.f32 %v288, %v329
    %v331 = vand.u32 %v188, 4294901760
    %v332 = vsub.f32 %v188, %v331
    %333 = vmatmul.f32.gmra.mxu0 %v332
    %v334 = vpop.f32.mrf.mxu0
    %v335 = vadd.f32 %v292, %v334
    %v336 = vand.u32 %v191, 4294901760
    %v337 = vsub.f32 %v191, %v336
    %338 = vmatmul.f32.gmra.mxu0 %v337
    %v339 = vpop.f32.mrf.mxu0
    %v340 = vadd.f32 %v296, %v339
    %v341 = vand.u32 %v194, 4294901760
    %v342 = vsub.f32 %v194, %v341
    %343 = vmatmul.f32.gmra.mxu0 %v342
    %v344 = vpop.f32.mrf.mxu0
    %v345 = vadd.f32 %v300, %v344
    %346 = vdwg.mxu0
    %347 = vmatpush.xpose.msra.mxu0 0.0
    %348 = vmatpush.xpose.msra.mxu0 0.0
    %349 = vmatpush.xpose.msra.mxu0 0.0
    %350 = vmatpush.xpose.msra.mxu0 0.0
    %351 = vmatpush.xpose.msra.mxu0 0.0
    %352 = vmatpush.xpose.msra.mxu0 0.0
    %353 = vmatpush.xpose.msra.mxu0 0.0
    %354 = vmatpush.xpose.msra.mxu0 0.0
    %355 = vmatpush.xpose.msra.mxu0 0.0
    %356 = vmatpush.xpose.msra.mxu0 0.0
    %357 = vmatpush.xpose.msra.mxu0 0.0
    %358 = vmatpush.xpose.msra.mxu0 0.0
    %v359 = vand.u32 %v194, 4294901760
    %360 = vmatpush.xpose.msra.mxu0 %v359
    %v361 = vand.u32 %v191, 4294901760
    %362 = vmatpush.xpose.msra.mxu0 %v361
    %v363 = vand.u32 %v188, 4294901760
    %364 = vmatpush.xpose.msra.mxu0 %v363
    %v365 = vand.u32 %v185, 4294901760
    %366 = vmatpush.xpose.msra.mxu0 %v365
    %v367 = vand.u32 %v185, 4294901760
    %v368 = vsub.f32 %v185, %v367
    %v369 = vand.u32 %v368, 4294901760
    %370 = vmatmul.f32.gmra.mxu0 %v369
    %v371 = vpop.f32.mrf.mxu0
    %v372 = vadd.f32 %v330, %v371
    %v373 = vand.u32 %v188, 4294901760
    %v374 = vsub.f32 %v188, %v373
    %v375 = vand.u32 %v374, 4294901760
    %376 = vmatmul.f32.gmra.mxu0 %v375
    %v377 = vpop.f32.mrf.mxu0
    %v378 = vadd.f32 %v335, %v377
    %v379 = vand.u32 %v191, 4294901760
    %v380 = vsub.f32 %v191, %v379
    %v381 = vand.u32 %v380, 4294901760
    %382 = vmatmul.f32.gmra.mxu0 %v381
    %v383 = vpop.f32.mrf.mxu0
    %v384 = vadd.f32 %v340, %v383
    %v385 = vand.u32 %v194, 4294901760
    %v386 = vsub.f32 %v194, %v385
    %v387 = vand.u32 %v386, 4294901760
    %388 = vmatmul.f32.gmra.mxu0 %v387
    %v389 = vpop.f32.mrf.mxu0
    %v390 = vadd.f32 %v345, %v389
    %391 = vdwg.mxu0
    %392 = vmatpush.xpose.msra.mxu0 0.0
    %393 = vmatpush.xpose.msra.mxu0 0.0
    %394 = vmatpush.xpose.msra.mxu0 0.0
    %395 = vmatpush.xpose.msra.mxu0 0.0
    %396 = vmatpush.xpose.msra.mxu0 0.0
    %397 = vmatpush.xpose.msra.mxu0 0.0
    %398 = vmatpush.xpose.msra.mxu0 0.0
    %399 = vmatpush.xpose.msra.mxu0 0.0
    %400 = vmatpush.xpose.msra.mxu0 0.0
    %401 = vmatpush.xpose.msra.mxu0 0.0
    %402 = vmatpush.xpose.msra.mxu0 0.0
    %403 = vmatpush.xpose.msra.mxu0 0.0
    %v404 = vand.u32 %v194, 4294901760
    %v405 = vsub.f32 %v194, %v404
    %v406 = vand.u32 %v405, 4294901760
    %407 = vmatpush.xpose.msra.mxu0 %v406
    %v408 = vand.u32 %v191, 4294901760
    %v409 = vsub.f32 %v191, %v408
    %v410 = vand.u32 %v409, 4294901760
    %411 = vmatpush.xpose.msra.mxu0 %v410
    %v412 = vand.u32 %v188, 4294901760
    %v413 = vsub.f32 %v188, %v412
    %v414 = vand.u32 %v413, 4294901760
    %415 = vmatpush.xpose.msra.mxu0 %v414
    %v416 = vand.u32 %v185, 4294901760
    %v417 = vsub.f32 %v185, %v416
    %v418 = vand.u32 %v417, 4294901760
    %419 = vmatpush.xpose.msra.mxu0 %v418
    %v420 = vand.u32 %v185, 4294901760
    %421 = vmatmul.f32.gmra.mxu0 %v420
    %v422 = vpop.f32.mrf.mxu0
    %v423 = vadd.f32 %v372, %v422
    %v424 = vand.u32 %v188, 4294901760
    %425 = vmatmul.f32.gmra.mxu0 %v424
    %v426 = vpop.f32.mrf.mxu0
    %v427 = vadd.f32 %v378, %v426
    %v428 = vand.u32 %v191, 4294901760
    %429 = vmatmul.f32.gmra.mxu0 %v428
    %v430 = vpop.f32.mrf.mxu0
    %v431 = vadd.f32 %v384, %v430
    %v432 = vand.u32 %v194, 4294901760
    %433 = vmatmul.f32.gmra.mxu0 %v432
    %v434 = vpop.f32.mrf.mxu0
    %v435 = vadd.f32 %v390, %v434
    %436 = vdwg.mxu0
    %437 = vmatpush.xpose.msra.mxu0 0.0
    %438 = vmatpush.xpose.msra.mxu0 0.0
    %439 = vmatpush.xpose.msra.mxu0 0.0
    %440 = vmatpush.xpose.msra.mxu0 0.0
    %441 = vmatpush.xpose.msra.mxu0 0.0
    %442 = vmatpush.xpose.msra.mxu0 0.0
    %443 = vmatpush.xpose.msra.mxu0 0.0
    %444 = vmatpush.xpose.msra.mxu0 0.0
    %445 = vmatpush.xpose.msra.mxu0 0.0
    %446 = vmatpush.xpose.msra.mxu0 0.0
    %447 = vmatpush.xpose.msra.mxu0 0.0
    %448 = vmatpush.xpose.msra.mxu0 0.0
    %v449 = vand.u32 %v194, 4294901760
    %450 = vmatpush.xpose.msra.mxu0 %v449
    %v451 = vand.u32 %v191, 4294901760
    %452 = vmatpush.xpose.msra.mxu0 %v451
    %v453 = vand.u32 %v188, 4294901760
    %454 = vmatpush.xpose.msra.mxu0 %v453
    %v455 = vand.u32 %v185, 4294901760
    %456 = vmatpush.xpose.msra.mxu0 %v455
    %v457 = vand.u32 %v185, 4294901760
    %458 = vmatmul.f32.gmra.mxu0 %v457
    %v459 = vpop.f32.mrf.mxu0
    %v460 = vadd.f32 %v423, %v459
    %v461 = vand.u32 %v188, 4294901760
    %462 = vmatmul.f32.gmra.mxu0 %v461
    %v463 = vpop.f32.mrf.mxu0
    %v464 = vadd.f32 %v427, %v463
    %v465 = vand.u32 %v191, 4294901760
    %466 = vmatmul.f32.gmra.mxu0 %v465
    %v467 = vpop.f32.mrf.mxu0
    %v468 = vadd.f32 %v431, %v467
    %v469 = vand.u32 %v194, 4294901760
    %470 = vmatmul.f32.gmra.mxu0 %v469
    %v471 = vpop.f32.mrf.mxu0
    %v472 = vadd.f32 %v435, %v471
    %473 = vdwg.mxu0
    %v474 = vlaneseq
    %v475 = vshrl.u32 %v474, 7
    %v476 = vadd.s32 %v475, 8
    %v477 = vadd.s32 %v475, 16
    %v478 = vadd.s32 %v475, 24
    %v479 = vperm.slane %v70, 0
    %v480 = vperm.slane %v71, 0
    %v481 = vperm.slane %v72, 0
    %v482 = vperm.slane %v73, 0
    %v483 = vperm.slane %v74, 0
    %v484 = vperm.slane %v75, 0
    %v485 = vperm.slane %v76, 0
    %v486 = vperm.slane %v77, 0
    %v487 = vperm.slane %v78, 0
    %v488 = vperm.slane %v79, 0
    %v489 = vperm.slane %v80, 0
    %v490 = vperm.slane %v81, 0
    %v491 = vperm.slane %v82, 0
    %v492 = vperm.slane %v83, 0
    %v493 = vperm.slane %v84, 0
    %v494 = vperm.slane %v85, 0
    %v495 = vperm.slane %v86, 0
    %v496 = vperm.slane %v87, 0
    %v497 = vperm.slane %v88, 0
    %v498 = vperm.slane %v89, 0
    %v499 = vperm.slane %v90, 0
    %v500 = vperm.slane %v91, 0
    %v501 = vperm.slane %v92, 0
    %v502 = vperm.slane %v93, 0
    %v503 = vperm.slane %v94, 0
    %vm504 = vcmp.eq.s32.totalorder %v479, %v475
    %vm505 = vcmp.eq.s32.totalorder %v479, %v476
    %vm506 = vcmp.eq.s32.totalorder %v479, %v477
    %vm507 = vcmp.eq.s32.totalorder %v479, %v478
    %vm508 = vcmp.eq.s32.totalorder %v480, %v475
    %vm509 = vcmp.eq.s32.totalorder %v480, %v476
    %vm510 = vcmp.eq.s32.totalorder %v480, %v477
    %vm511 = vcmp.eq.s32.totalorder %v480, %v478
    %vm512 = vcmp.eq.s32.totalorder %v481, %v475
    %vm513 = vcmp.eq.s32.totalorder %v481, %v476
    %vm514 = vcmp.eq.s32.totalorder %v481, %v477
    %vm515 = vcmp.eq.s32.totalorder %v481, %v478
    %vm516 = vcmp.eq.s32.totalorder %v482, %v475
    %vm517 = vcmp.eq.s32.totalorder %v482, %v476
    %vm518 = vcmp.eq.s32.totalorder %v482, %v477
    %vm519 = vcmp.eq.s32.totalorder %v482, %v478
    %vm520 = vcmp.eq.s32.totalorder %v483, %v475
    %vm521 = vcmp.eq.s32.totalorder %v483, %v476
    %vm522 = vcmp.eq.s32.totalorder %v483, %v477
    %vm523 = vcmp.eq.s32.totalorder %v483, %v478
    %vm524 = vcmp.eq.s32.totalorder %v484, %v475
    %vm525 = vcmp.eq.s32.totalorder %v484, %v476
    %vm526 = vcmp.eq.s32.totalorder %v484, %v477
    %vm527 = vcmp.eq.s32.totalorder %v484, %v478
    %vm528 = vcmp.eq.s32.totalorder %v485, %v475
    %vm529 = vcmp.eq.s32.totalorder %v485, %v476
    %vm530 = vcmp.eq.s32.totalorder %v485, %v477
    %vm531 = vcmp.eq.s32.totalorder %v485, %v478
    %vm532 = vcmp.eq.s32.totalorder %v486, %v475
    %vm533 = vcmp.eq.s32.totalorder %v486, %v476
    %vm534 = vcmp.eq.s32.totalorder %v486, %v477
    %vm535 = vcmp.eq.s32.totalorder %v486, %v478
    %vm536 = vcmp.eq.s32.totalorder %v487, %v475
    %vm537 = vcmp.eq.s32.totalorder %v487, %v476
    %vm538 = vcmp.eq.s32.totalorder %v487, %v477
    %vm539 = vcmp.eq.s32.totalorder %v487, %v478
    %vm540 = vcmp.eq.s32.totalorder %v488, %v475
    %vm541 = vcmp.eq.s32.totalorder %v488, %v476
    %vm542 = vcmp.eq.s32.totalorder %v488, %v477
    %vm543 = vcmp.eq.s32.totalorder %v488, %v478
    %vm544 = vcmp.eq.s32.totalorder %v489, %v475
    %vm545 = vcmp.eq.s32.totalorder %v489, %v476
    %vm546 = vcmp.eq.s32.totalorder %v489, %v477
    %vm547 = vcmp.eq.s32.totalorder %v489, %v478
    %vm548 = vcmp.eq.s32.totalorder %v490, %v475
    %vm549 = vcmp.eq.s32.totalorder %v490, %v476
    %vm550 = vcmp.eq.s32.totalorder %v490, %v477
    %vm551 = vcmp.eq.s32.totalorder %v490, %v478
    %vm552 = vcmp.eq.s32.totalorder %v491, %v475
    %vm553 = vcmp.eq.s32.totalorder %v491, %v476
    %vm554 = vcmp.eq.s32.totalorder %v491, %v477
    %vm555 = vcmp.eq.s32.totalorder %v491, %v478
    %vm556 = vcmp.eq.s32.totalorder %v492, %v475
    %vm557 = vcmp.eq.s32.totalorder %v492, %v476
    %vm558 = vcmp.eq.s32.totalorder %v492, %v477
    %vm559 = vcmp.eq.s32.totalorder %v492, %v478
    %vm560 = vcmp.eq.s32.totalorder %v493, %v475
    %vm561 = vcmp.eq.s32.totalorder %v493, %v476
    %vm562 = vcmp.eq.s32.totalorder %v493, %v477
    %vm563 = vcmp.eq.s32.totalorder %v493, %v478
    %vm564 = vcmp.eq.s32.totalorder %v494, %v475
    %vm565 = vcmp.eq.s32.totalorder %v494, %v476
    %vm566 = vcmp.eq.s32.totalorder %v494, %v477
    %vm567 = vcmp.eq.s32.totalorder %v494, %v478
    %vm568 = vcmp.eq.s32.totalorder %v495, %v475
    %vm569 = vcmp.eq.s32.totalorder %v495, %v476
    %vm570 = vcmp.eq.s32.totalorder %v495, %v477
    %vm571 = vcmp.eq.s32.totalorder %v495, %v478
    %vm572 = vcmp.eq.s32.totalorder %v496, %v475
    %vm573 = vcmp.eq.s32.totalorder %v496, %v476
    %vm574 = vcmp.eq.s32.totalorder %v496, %v477
    %vm575 = vcmp.eq.s32.totalorder %v496, %v478
    %vm576 = vcmp.eq.s32.totalorder %v497, %v475
    %vm577 = vcmp.eq.s32.totalorder %v497, %v476
    %vm578 = vcmp.eq.s32.totalorder %v497, %v477
    %vm579 = vcmp.eq.s32.totalorder %v497, %v478
    %vm580 = vcmp.eq.s32.totalorder %v498, %v475
    %vm581 = vcmp.eq.s32.totalorder %v498, %v476
    %vm582 = vcmp.eq.s32.totalorder %v498, %v477
    %vm583 = vcmp.eq.s32.totalorder %v498, %v478
    %vm584 = vcmp.eq.s32.totalorder %v499, %v475
    %vm585 = vcmp.eq.s32.totalorder %v499, %v476
    %vm586 = vcmp.eq.s32.totalorder %v499, %v477
    %vm587 = vcmp.eq.s32.totalorder %v499, %v478
    %vm588 = vcmp.eq.s32.totalorder %v500, %v475
    %vm589 = vcmp.eq.s32.totalorder %v500, %v476
    %vm590 = vcmp.eq.s32.totalorder %v500, %v477
    %vm591 = vcmp.eq.s32.totalorder %v500, %v478
    %vm592 = vcmp.eq.s32.totalorder %v501, %v475
    %vm593 = vcmp.eq.s32.totalorder %v501, %v476
    %vm594 = vcmp.eq.s32.totalorder %v501, %v477
    %vm595 = vcmp.eq.s32.totalorder %v501, %v478
    %vm596 = vcmp.eq.s32.totalorder %v502, %v475
    %vm597 = vcmp.eq.s32.totalorder %v502, %v476
    %vm598 = vcmp.eq.s32.totalorder %v502, %v477
    %vm599 = vcmp.eq.s32.totalorder %v502, %v478
    %vm600 = vcmp.eq.s32.totalorder %v503, %v475
    %vm601 = vcmp.eq.s32.totalorder %v503, %v476
    %vm602 = vcmp.eq.s32.totalorder %v503, %v477
    %vm603 = vcmp.eq.s32.totalorder %v503, %v478
    %v604 = vsel %vm504, %v460, 0.0
    %v605 = vsel %vm505, %v464, 0.0
    %v606 = vsel %vm506, %v468, 0.0
    %v607 = vsel %vm507, %v472, 0.0
    %v608 = vsel %vm508, %v460, 0.0
    %v609 = vsel %vm509, %v464, 0.0
    %v610 = vsel %vm510, %v468, 0.0
    %v611 = vsel %vm511, %v472, 0.0
    %v612 = vsel %vm512, %v460, 0.0
    %v613 = vsel %vm513, %v464, 0.0
    %v614 = vsel %vm514, %v468, 0.0
    %v615 = vsel %vm515, %v472, 0.0
    %v616 = vsel %vm516, %v460, 0.0
    %v617 = vsel %vm517, %v464, 0.0
    %v618 = vsel %vm518, %v468, 0.0
    %v619 = vsel %vm519, %v472, 0.0
    %v620 = vsel %vm520, %v460, 0.0
    %v621 = vsel %vm521, %v464, 0.0
    %v622 = vsel %vm522, %v468, 0.0
    %v623 = vsel %vm523, %v472, 0.0
    %v624 = vsel %vm524, %v460, 0.0
    %v625 = vsel %vm525, %v464, 0.0
    %v626 = vsel %vm526, %v468, 0.0
    %v627 = vsel %vm527, %v472, 0.0
    %v628 = vsel %vm528, %v460, 0.0
    %v629 = vsel %vm529, %v464, 0.0
    %v630 = vsel %vm530, %v468, 0.0
    %v631 = vsel %vm531, %v472, 0.0
    %v632 = vsel %vm532, %v460, 0.0
    %v633 = vsel %vm533, %v464, 0.0
    %v634 = vsel %vm534, %v468, 0.0
    %v635 = vsel %vm535, %v472, 0.0
    %v636 = vsel %vm536, %v460, 0.0
    %v637 = vsel %vm537, %v464, 0.0
    %v638 = vsel %vm538, %v468, 0.0
    %v639 = vsel %vm539, %v472, 0.0
    %v640 = vsel %vm540, %v460, 0.0
    %v641 = vsel %vm541, %v464, 0.0
    %v642 = vsel %vm542, %v468, 0.0
    %v643 = vsel %vm543, %v472, 0.0
    %v644 = vsel %vm544, %v460, 0.0
    %v645 = vsel %vm545, %v464, 0.0
    %v646 = vsel %vm546, %v468, 0.0
    %v647 = vsel %vm547, %v472, 0.0
    %v648 = vsel %vm548, %v460, 0.0
    %v649 = vsel %vm549, %v464, 0.0
    %v650 = vsel %vm550, %v468, 0.0
    %v651 = vsel %vm551, %v472, 0.0
    %v652 = vsel %vm552, %v460, 0.0
    %v653 = vsel %vm553, %v464, 0.0
    %v654 = vsel %vm554, %v468, 0.0
    %v655 = vsel %vm555, %v472, 0.0
    %v656 = vsel %vm556, %v460, 0.0
    %v657 = vsel %vm557, %v464, 0.0
    %v658 = vsel %vm558, %v468, 0.0
    %v659 = vsel %vm559, %v472, 0.0
    %v660 = vsel %vm560, %v460, 0.0
    %v661 = vsel %vm561, %v464, 0.0
    %v662 = vsel %vm562, %v468, 0.0
    %v663 = vsel %vm563, %v472, 0.0
    %v664 = vsel %vm564, %v460, 0.0
    %v665 = vsel %vm565, %v464, 0.0
    %v666 = vsel %vm566, %v468, 0.0
    %v667 = vsel %vm567, %v472, 0.0
    %v668 = vsel %vm568, %v460, 0.0
    %v669 = vsel %vm569, %v464, 0.0
    %v670 = vsel %vm570, %v468, 0.0
    %v671 = vsel %vm571, %v472, 0.0
    %v672 = vsel %vm572, %v460, 0.0
    %v673 = vsel %vm573, %v464, 0.0
    %v674 = vsel %vm574, %v468, 0.0
    %v675 = vsel %vm575, %v472, 0.0
    %v676 = vsel %vm576, %v460, 0.0
    %v677 = vsel %vm577, %v464, 0.0
    %v678 = vsel %vm578, %v468, 0.0
    %v679 = vsel %vm579, %v472, 0.0
    %v680 = vsel %vm580, %v460, 0.0
    %v681 = vsel %vm581, %v464, 0.0
    %v682 = vsel %vm582, %v468, 0.0
    %v683 = vsel %vm583, %v472, 0.0
    %v684 = vsel %vm584, %v460, 0.0
    %v685 = vsel %vm585, %v464, 0.0
    %v686 = vsel %vm586, %v468, 0.0
    %v687 = vsel %vm587, %v472, 0.0
    %v688 = vsel %vm588, %v460, 0.0
    %v689 = vsel %vm589, %v464, 0.0
    %v690 = vsel %vm590, %v468, 0.0
    %v691 = vsel %vm591, %v472, 0.0
    %v692 = vsel %vm592, %v460, 0.0
    %v693 = vsel %vm593, %v464, 0.0
    %v694 = vsel %vm594, %v468, 0.0
    %v695 = vsel %vm595, %v472, 0.0
    %v696 = vsel %vm596, %v460, 0.0
    %v697 = vsel %vm597, %v464, 0.0
    %v698 = vsel %vm598, %v468, 0.0
    %v699 = vsel %vm599, %v472, 0.0
    %v700 = vsel %vm600, %v460, 0.0
    %v701 = vsel %vm601, %v464, 0.0
    %v702 = vsel %vm602, %v468, 0.0
    %v703 = vsel %vm603, %v472, 0.0
    %vm704 = vcmask 261120
    %v705 = vsel %vm704, %v604, 0.0
    %706 = vadd.xlane.f32.xlu0 %v705
    %v707 = vpop.xlane.xlu0 %706
    %v708 = vsel %vm704, %v605, 0.0
    %709 = vadd.xlane.f32.xlu0 %v708
    %v710 = vpop.xlane.xlu0 %709
    %v711 = vsel %vm704, %v606, 0.0
    %712 = vadd.xlane.f32.xlu0 %v711
    %v713 = vpop.xlane.xlu0 %712
    %v714 = vsel %vm704, %v607, 0.0
    %715 = vadd.xlane.f32.xlu0 %v714
    %v716 = vpop.xlane.xlu0 %715
    %v717 = vsel %vm704, %v608, 0.0
    %718 = vadd.xlane.f32.xlu0 %v717
    %v719 = vpop.xlane.xlu0 %718
    %v720 = vsel %vm704, %v609, 0.0
    %721 = vadd.xlane.f32.xlu0 %v720
    %v722 = vpop.xlane.xlu0 %721
    %v723 = vsel %vm704, %v610, 0.0
    %724 = vadd.xlane.f32.xlu0 %v723
    %v725 = vpop.xlane.xlu0 %724
    %v726 = vsel %vm704, %v611, 0.0
    %727 = vadd.xlane.f32.xlu0 %v726
    %v728 = vpop.xlane.xlu0 %727
    %v729 = vsel %vm704, %v612, 0.0
    %730 = vadd.xlane.f32.xlu0 %v729
    %v731 = vpop.xlane.xlu0 %730
    %v732 = vsel %vm704, %v613, 0.0
    %733 = vadd.xlane.f32.xlu0 %v732
    %v734 = vpop.xlane.xlu0 %733
    %v735 = vsel %vm704, %v614, 0.0
    %736 = vadd.xlane.f32.xlu0 %v735
    %v737 = vpop.xlane.xlu0 %736
    %v738 = vsel %vm704, %v615, 0.0
    %739 = vadd.xlane.f32.xlu0 %v738
    %v740 = vpop.xlane.xlu0 %739
    %v741 = vsel %vm704, %v616, 0.0
    %742 = vadd.xlane.f32.xlu0 %v741
    %v743 = vpop.xlane.xlu0 %742
    %v744 = vsel %vm704, %v617, 0.0
    %745 = vadd.xlane.f32.xlu0 %v744
    %v746 = vpop.xlane.xlu0 %745
    %v747 = vsel %vm704, %v618, 0.0
    %748 = vadd.xlane.f32.xlu0 %v747
    %v749 = vpop.xlane.xlu0 %748
    %v750 = vsel %vm704, %v619, 0.0
    %751 = vadd.xlane.f32.xlu0 %v750
    %v752 = vpop.xlane.xlu0 %751
    %v753 = vsel %vm704, %v620, 0.0
    %754 = vadd.xlane.f32.xlu0 %v753
    %v755 = vpop.xlane.xlu0 %754
    %v756 = vsel %vm704, %v621, 0.0
    %757 = vadd.xlane.f32.xlu0 %v756
    %v758 = vpop.xlane.xlu0 %757
    %v759 = vsel %vm704, %v622, 0.0
    %760 = vadd.xlane.f32.xlu0 %v759
    %v761 = vpop.xlane.xlu0 %760
    %v762 = vsel %vm704, %v623, 0.0
    %763 = vadd.xlane.f32.xlu0 %v762
    %v764 = vpop.xlane.xlu0 %763
    %v765 = vsel %vm704, %v624, 0.0
    %766 = vadd.xlane.f32.xlu0 %v765
    %v767 = vpop.xlane.xlu0 %766
    %v768 = vsel %vm704, %v625, 0.0
    %769 = vadd.xlane.f32.xlu0 %v768
    %v770 = vpop.xlane.xlu0 %769
    %v771 = vsel %vm704, %v626, 0.0
    %772 = vadd.xlane.f32.xlu0 %v771
    %v773 = vpop.xlane.xlu0 %772
    %v774 = vsel %vm704, %v627, 0.0
    %775 = vadd.xlane.f32.xlu0 %v774
    %v776 = vpop.xlane.xlu0 %775
    %v777 = vsel %vm704, %v628, 0.0
    %778 = vadd.xlane.f32.xlu0 %v777
    %v779 = vpop.xlane.xlu0 %778
    %v780 = vsel %vm704, %v629, 0.0
    %781 = vadd.xlane.f32.xlu0 %v780
    %v782 = vpop.xlane.xlu0 %781
    %v783 = vsel %vm704, %v630, 0.0
    %784 = vadd.xlane.f32.xlu0 %v783
    %v785 = vpop.xlane.xlu0 %784
    %v786 = vsel %vm704, %v631, 0.0
    %787 = vadd.xlane.f32.xlu0 %v786
    %v788 = vpop.xlane.xlu0 %787
    %v789 = vsel %vm704, %v632, 0.0
    %790 = vadd.xlane.f32.xlu0 %v789
    %v791 = vpop.xlane.xlu0 %790
    %v792 = vsel %vm704, %v633, 0.0
    %793 = vadd.xlane.f32.xlu0 %v792
    %v794 = vpop.xlane.xlu0 %793
    %v795 = vsel %vm704, %v634, 0.0
    %796 = vadd.xlane.f32.xlu0 %v795
    %v797 = vpop.xlane.xlu0 %796
    %v798 = vsel %vm704, %v635, 0.0
    %799 = vadd.xlane.f32.xlu0 %v798
    %v800 = vpop.xlane.xlu0 %799
    %v801 = vsel %vm704, %v636, 0.0
    %802 = vadd.xlane.f32.xlu0 %v801
    %v803 = vpop.xlane.xlu0 %802
    %v804 = vsel %vm704, %v637, 0.0
    %805 = vadd.xlane.f32.xlu0 %v804
    %v806 = vpop.xlane.xlu0 %805
    %v807 = vsel %vm704, %v638, 0.0
    %808 = vadd.xlane.f32.xlu0 %v807
    %v809 = vpop.xlane.xlu0 %808
    %v810 = vsel %vm704, %v639, 0.0
    %811 = vadd.xlane.f32.xlu0 %v810
    %v812 = vpop.xlane.xlu0 %811
    %v813 = vsel %vm704, %v640, 0.0
    %814 = vadd.xlane.f32.xlu0 %v813
    %v815 = vpop.xlane.xlu0 %814
    %v816 = vsel %vm704, %v641, 0.0
    %817 = vadd.xlane.f32.xlu0 %v816
    %v818 = vpop.xlane.xlu0 %817
    %v819 = vsel %vm704, %v642, 0.0
    %820 = vadd.xlane.f32.xlu0 %v819
    %v821 = vpop.xlane.xlu0 %820
    %v822 = vsel %vm704, %v643, 0.0
    %823 = vadd.xlane.f32.xlu0 %v822
    %v824 = vpop.xlane.xlu0 %823
    %v825 = vsel %vm704, %v644, 0.0
    %826 = vadd.xlane.f32.xlu0 %v825
    %v827 = vpop.xlane.xlu0 %826
    %v828 = vsel %vm704, %v645, 0.0
    %829 = vadd.xlane.f32.xlu0 %v828
    %v830 = vpop.xlane.xlu0 %829
    %v831 = vsel %vm704, %v646, 0.0
    %832 = vadd.xlane.f32.xlu0 %v831
    %v833 = vpop.xlane.xlu0 %832
    %v834 = vsel %vm704, %v647, 0.0
    %835 = vadd.xlane.f32.xlu0 %v834
    %v836 = vpop.xlane.xlu0 %835
    %v837 = vsel %vm704, %v648, 0.0
    %838 = vadd.xlane.f32.xlu0 %v837
    %v839 = vpop.xlane.xlu0 %838
    %v840 = vsel %vm704, %v649, 0.0
    %841 = vadd.xlane.f32.xlu0 %v840
    %v842 = vpop.xlane.xlu0 %841
    %v843 = vsel %vm704, %v650, 0.0
    %844 = vadd.xlane.f32.xlu0 %v843
    %v845 = vpop.xlane.xlu0 %844
    %v846 = vsel %vm704, %v651, 0.0
    %847 = vadd.xlane.f32.xlu0 %v846
    %v848 = vpop.xlane.xlu0 %847
    %v849 = vsel %vm704, %v652, 0.0
    %850 = vadd.xlane.f32.xlu0 %v849
    %v851 = vpop.xlane.xlu0 %850
    %v852 = vsel %vm704, %v653, 0.0
    %853 = vadd.xlane.f32.xlu0 %v852
    %v854 = vpop.xlane.xlu0 %853
    %v855 = vsel %vm704, %v654, 0.0
    %856 = vadd.xlane.f32.xlu0 %v855
    %v857 = vpop.xlane.xlu0 %856
    %v858 = vsel %vm704, %v655, 0.0
    %859 = vadd.xlane.f32.xlu0 %v858
    %v860 = vpop.xlane.xlu0 %859
    %v861 = vsel %vm704, %v656, 0.0
    %862 = vadd.xlane.f32.xlu0 %v861
    %v863 = vpop.xlane.xlu0 %862
    %v864 = vsel %vm704, %v657, 0.0
    %865 = vadd.xlane.f32.xlu0 %v864
    %v866 = vpop.xlane.xlu0 %865
    %v867 = vsel %vm704, %v658, 0.0
    %868 = vadd.xlane.f32.xlu0 %v867
    %v869 = vpop.xlane.xlu0 %868
    %v870 = vsel %vm704, %v659, 0.0
    %871 = vadd.xlane.f32.xlu0 %v870
    %v872 = vpop.xlane.xlu0 %871
    %v873 = vsel %vm704, %v660, 0.0
    %874 = vadd.xlane.f32.xlu0 %v873
    %v875 = vpop.xlane.xlu0 %874
    %v876 = vsel %vm704, %v661, 0.0
    %877 = vadd.xlane.f32.xlu0 %v876
    %v878 = vpop.xlane.xlu0 %877
    %v879 = vsel %vm704, %v662, 0.0
    %880 = vadd.xlane.f32.xlu0 %v879
    %v881 = vpop.xlane.xlu0 %880
    %v882 = vsel %vm704, %v663, 0.0
    %883 = vadd.xlane.f32.xlu0 %v882
    %v884 = vpop.xlane.xlu0 %883
    %v885 = vsel %vm704, %v664, 0.0
    %886 = vadd.xlane.f32.xlu0 %v885
    %v887 = vpop.xlane.xlu0 %886
    %v888 = vsel %vm704, %v665, 0.0
    %889 = vadd.xlane.f32.xlu0 %v888
    %v890 = vpop.xlane.xlu0 %889
    %v891 = vsel %vm704, %v666, 0.0
    %892 = vadd.xlane.f32.xlu0 %v891
    %v893 = vpop.xlane.xlu0 %892
    %v894 = vsel %vm704, %v667, 0.0
    %895 = vadd.xlane.f32.xlu0 %v894
    %v896 = vpop.xlane.xlu0 %895
    %v897 = vsel %vm704, %v668, 0.0
    %898 = vadd.xlane.f32.xlu0 %v897
    %v899 = vpop.xlane.xlu0 %898
    %v900 = vsel %vm704, %v669, 0.0
    %901 = vadd.xlane.f32.xlu0 %v900
    %v902 = vpop.xlane.xlu0 %901
    %v903 = vsel %vm704, %v670, 0.0
    %904 = vadd.xlane.f32.xlu0 %v903
    %v905 = vpop.xlane.xlu0 %904
    %v906 = vsel %vm704, %v671, 0.0
    %907 = vadd.xlane.f32.xlu0 %v906
    %v908 = vpop.xlane.xlu0 %907
    %v909 = vsel %vm704, %v672, 0.0
    %910 = vadd.xlane.f32.xlu0 %v909
    %v911 = vpop.xlane.xlu0 %910
    %v912 = vsel %vm704, %v673, 0.0
    %913 = vadd.xlane.f32.xlu0 %v912
    %v914 = vpop.xlane.xlu0 %913
    %v915 = vsel %vm704, %v674, 0.0
    %916 = vadd.xlane.f32.xlu0 %v915
    %v917 = vpop.xlane.xlu0 %916
    %v918 = vsel %vm704, %v675, 0.0
    %919 = vadd.xlane.f32.xlu0 %v918
    %v920 = vpop.xlane.xlu0 %919
    %v921 = vsel %vm704, %v676, 0.0
    %922 = vadd.xlane.f32.xlu0 %v921
    %v923 = vpop.xlane.xlu0 %922
    %v924 = vsel %vm704, %v677, 0.0
    %925 = vadd.xlane.f32.xlu0 %v924
    %v926 = vpop.xlane.xlu0 %925
    %v927 = vsel %vm704, %v678, 0.0
    %928 = vadd.xlane.f32.xlu0 %v927
    %v929 = vpop.xlane.xlu0 %928
    %v930 = vsel %vm704, %v679, 0.0
    %931 = vadd.xlane.f32.xlu0 %v930
    %v932 = vpop.xlane.xlu0 %931
    %v933 = vsel %vm704, %v680, 0.0
    %934 = vadd.xlane.f32.xlu0 %v933
    %v935 = vpop.xlane.xlu0 %934
    %v936 = vsel %vm704, %v681, 0.0
    %937 = vadd.xlane.f32.xlu0 %v936
    %v938 = vpop.xlane.xlu0 %937
    %v939 = vsel %vm704, %v682, 0.0
    %940 = vadd.xlane.f32.xlu0 %v939
    %v941 = vpop.xlane.xlu0 %940
    %v942 = vsel %vm704, %v683, 0.0
    %943 = vadd.xlane.f32.xlu0 %v942
    %v944 = vpop.xlane.xlu0 %943
    %v945 = vsel %vm704, %v684, 0.0
    %946 = vadd.xlane.f32.xlu0 %v945
    %v947 = vpop.xlane.xlu0 %946
    %v948 = vsel %vm704, %v685, 0.0
    %949 = vadd.xlane.f32.xlu0 %v948
    %v950 = vpop.xlane.xlu0 %949
    %v951 = vsel %vm704, %v686, 0.0
    %952 = vadd.xlane.f32.xlu0 %v951
    %v953 = vpop.xlane.xlu0 %952
    %v954 = vsel %vm704, %v687, 0.0
    %955 = vadd.xlane.f32.xlu0 %v954
    %v956 = vpop.xlane.xlu0 %955
    %v957 = vsel %vm704, %v688, 0.0
    %958 = vadd.xlane.f32.xlu0 %v957
    %v959 = vpop.xlane.xlu0 %958
    %v960 = vsel %vm704, %v689, 0.0
    %961 = vadd.xlane.f32.xlu0 %v960
    %v962 = vpop.xlane.xlu0 %961
    %v963 = vsel %vm704, %v690, 0.0
    %964 = vadd.xlane.f32.xlu0 %v963
    %v965 = vpop.xlane.xlu0 %964
    %v966 = vsel %vm704, %v691, 0.0
    %967 = vadd.xlane.f32.xlu0 %v966
    %v968 = vpop.xlane.xlu0 %967
    %v969 = vsel %vm704, %v692, 0.0
    %970 = vadd.xlane.f32.xlu0 %v969
    %v971 = vpop.xlane.xlu0 %970
    %v972 = vsel %vm704, %v693, 0.0
    %973 = vadd.xlane.f32.xlu0 %v972
    %v974 = vpop.xlane.xlu0 %973
    %v975 = vsel %vm704, %v694, 0.0
    %976 = vadd.xlane.f32.xlu0 %v975
    %v977 = vpop.xlane.xlu0 %976
    %v978 = vsel %vm704, %v695, 0.0
    %979 = vadd.xlane.f32.xlu0 %v978
    %v980 = vpop.xlane.xlu0 %979
    %v981 = vsel %vm704, %v696, 0.0
    %982 = vadd.xlane.f32.xlu0 %v981
    %v983 = vpop.xlane.xlu0 %982
    %v984 = vsel %vm704, %v697, 0.0
    %985 = vadd.xlane.f32.xlu0 %v984
    %v986 = vpop.xlane.xlu0 %985
    %v987 = vsel %vm704, %v698, 0.0
    %988 = vadd.xlane.f32.xlu0 %v987
    %v989 = vpop.xlane.xlu0 %988
    %v990 = vsel %vm704, %v699, 0.0
    %991 = vadd.xlane.f32.xlu0 %v990
    %v992 = vpop.xlane.xlu0 %991
    %v993 = vsel %vm704, %v700, 0.0
    %994 = vadd.xlane.f32.xlu0 %v993
    %v995 = vpop.xlane.xlu0 %994
    %v996 = vsel %vm704, %v701, 0.0
    %997 = vadd.xlane.f32.xlu0 %v996
    %v998 = vpop.xlane.xlu0 %997
    %v999 = vsel %vm704, %v702, 0.0
    %1000 = vadd.xlane.f32.xlu0 %v999
    %v1001 = vpop.xlane.xlu0 %1000
    %v1002 = vsel %vm704, %v703, 0.0
    %1003 = vadd.xlane.f32.xlu0 %v1002
    %v1004 = vpop.xlane.xlu0 %1003
    %v1105 = vlaneseq
    %v1106 = vand.u32 %v1105, 127
    %v1107 = vperm.slane %v707, %v1106
    %v1108 = vadd.s32 %v1106, 4294967288
    %v1109 = vperm.slane %v710, %v1108
    %vm1110 = vcmask 130112
    %v1111 = vsel %vm1110, %v1109, %v1107
    %v1112 = vadd.s32 %v1106, 4294967280
    %v1113 = vperm.slane %v713, %v1112
    %vm1114 = vcmask 195712
    %v1115 = vsel %vm1114, %v1113, %v1111
    %v1116 = vadd.s32 %v1106, 4294967272
    %v1117 = vperm.slane %v716, %v1116
    %vm1118 = vcmask 261312
    %v1119 = vsel %vm1118, %v1117, %v1115
    %v1120 = vperm.slane %v719, %v1106
    %v1121 = vperm.slane %v722, %v1108
    %v1122 = vsel %vm1110, %v1121, %v1120
    %v1123 = vperm.slane %v725, %v1112
    %v1124 = vsel %vm1114, %v1123, %v1122
    %v1125 = vperm.slane %v728, %v1116
    %v1126 = vsel %vm1118, %v1125, %v1124
    %v1127 = vperm.slane %v731, %v1106
    %v1128 = vperm.slane %v734, %v1108
    %v1129 = vsel %vm1110, %v1128, %v1127
    %v1130 = vperm.slane %v737, %v1112
    %v1131 = vsel %vm1114, %v1130, %v1129
    %v1132 = vperm.slane %v740, %v1116
    %v1133 = vsel %vm1118, %v1132, %v1131
    %v1134 = vperm.slane %v743, %v1106
    %v1135 = vperm.slane %v746, %v1108
    %v1136 = vsel %vm1110, %v1135, %v1134
    %v1137 = vperm.slane %v749, %v1112
    %v1138 = vsel %vm1114, %v1137, %v1136
    %v1139 = vperm.slane %v752, %v1116
    %v1140 = vsel %vm1118, %v1139, %v1138
    %v1141 = vperm.slane %v755, %v1106
    %v1142 = vperm.slane %v758, %v1108
    %v1143 = vsel %vm1110, %v1142, %v1141
    %v1144 = vperm.slane %v761, %v1112
    %v1145 = vsel %vm1114, %v1144, %v1143
    %v1146 = vperm.slane %v764, %v1116
    %v1147 = vsel %vm1118, %v1146, %v1145
    %v1148 = vperm.slane %v767, %v1106
    %v1149 = vperm.slane %v770, %v1108
    %v1150 = vsel %vm1110, %v1149, %v1148
    %v1151 = vperm.slane %v773, %v1112
    %v1152 = vsel %vm1114, %v1151, %v1150
    %v1153 = vperm.slane %v776, %v1116
    %v1154 = vsel %vm1118, %v1153, %v1152
    %v1155 = vperm.slane %v779, %v1106
    %v1156 = vperm.slane %v782, %v1108
    %v1157 = vsel %vm1110, %v1156, %v1155
    %v1158 = vperm.slane %v785, %v1112
    %v1159 = vsel %vm1114, %v1158, %v1157
    %v1160 = vperm.slane %v788, %v1116
    %v1161 = vsel %vm1118, %v1160, %v1159
    %v1162 = vperm.slane %v791, %v1106
    %v1163 = vperm.slane %v794, %v1108
    %v1164 = vsel %vm1110, %v1163, %v1162
    %v1165 = vperm.slane %v797, %v1112
    %v1166 = vsel %vm1114, %v1165, %v1164
    %v1167 = vperm.slane %v800, %v1116
    %v1168 = vsel %vm1118, %v1167, %v1166
    %v1169 = vperm.slane %v803, %v1106
    %v1170 = vperm.slane %v806, %v1108
    %v1171 = vsel %vm1110, %v1170, %v1169
    %v1172 = vperm.slane %v809, %v1112
    %v1173 = vsel %vm1114, %v1172, %v1171
    %v1174 = vperm.slane %v812, %v1116
    %v1175 = vsel %vm1118, %v1174, %v1173
    %v1176 = vperm.slane %v815, %v1106
    %v1177 = vperm.slane %v818, %v1108
    %v1178 = vsel %vm1110, %v1177, %v1176
    %v1179 = vperm.slane %v821, %v1112
    %v1180 = vsel %vm1114, %v1179, %v1178
    %v1181 = vperm.slane %v824, %v1116
    %v1182 = vsel %vm1118, %v1181, %v1180
    %v1183 = vperm.slane %v827, %v1106
    %v1184 = vperm.slane %v830, %v1108
    %v1185 = vsel %vm1110, %v1184, %v1183
    %v1186 = vperm.slane %v833, %v1112
    %v1187 = vsel %vm1114, %v1186, %v1185
    %v1188 = vperm.slane %v836, %v1116
    %v1189 = vsel %vm1118, %v1188, %v1187
    %v1190 = vperm.slane %v839, %v1106
    %v1191 = vperm.slane %v842, %v1108
    %v1192 = vsel %vm1110, %v1191, %v1190
    %v1193 = vperm.slane %v845, %v1112
    %v1194 = vsel %vm1114, %v1193, %v1192
    %v1195 = vperm.slane %v848, %v1116
    %v1196 = vsel %vm1118, %v1195, %v1194
    %v1197 = vperm.slane %v851, %v1106
    %v1198 = vperm.slane %v854, %v1108
    %v1199 = vsel %vm1110, %v1198, %v1197
    %v1200 = vperm.slane %v857, %v1112
    %v1201 = vsel %vm1114, %v1200, %v1199
    %v1202 = vperm.slane %v860, %v1116
    %v1203 = vsel %vm1118, %v1202, %v1201
    %v1204 = vperm.slane %v863, %v1106
    %v1205 = vperm.slane %v866, %v1108
    %v1206 = vsel %vm1110, %v1205, %v1204
    %v1207 = vperm.slane %v869, %v1112
    %v1208 = vsel %vm1114, %v1207, %v1206
    %v1209 = vperm.slane %v872, %v1116
    %v1210 = vsel %vm1118, %v1209, %v1208
    %v1211 = vperm.slane %v875, %v1106
    %v1212 = vperm.slane %v878, %v1108
    %v1213 = vsel %vm1110, %v1212, %v1211
    %v1214 = vperm.slane %v881, %v1112
    %v1215 = vsel %vm1114, %v1214, %v1213
    %v1216 = vperm.slane %v884, %v1116
    %v1217 = vsel %vm1118, %v1216, %v1215
    %v1218 = vperm.slane %v887, %v1106
    %v1219 = vperm.slane %v890, %v1108
    %v1220 = vsel %vm1110, %v1219, %v1218
    %v1221 = vperm.slane %v893, %v1112
    %v1222 = vsel %vm1114, %v1221, %v1220
    %v1223 = vperm.slane %v896, %v1116
    %v1224 = vsel %vm1118, %v1223, %v1222
    %v1225 = vperm.slane %v899, %v1106
    %v1226 = vperm.slane %v902, %v1108
    %v1227 = vsel %vm1110, %v1226, %v1225
    %v1228 = vperm.slane %v905, %v1112
    %v1229 = vsel %vm1114, %v1228, %v1227
    %v1230 = vperm.slane %v908, %v1116
    %v1231 = vsel %vm1118, %v1230, %v1229
    %v1232 = vperm.slane %v911, %v1106
    %v1233 = vperm.slane %v914, %v1108
    %v1234 = vsel %vm1110, %v1233, %v1232
    %v1235 = vperm.slane %v917, %v1112
    %v1236 = vsel %vm1114, %v1235, %v1234
    %v1237 = vperm.slane %v920, %v1116
    %v1238 = vsel %vm1118, %v1237, %v1236
    %v1239 = vperm.slane %v923, %v1106
    %v1240 = vperm.slane %v926, %v1108
    %v1241 = vsel %vm1110, %v1240, %v1239
    %v1242 = vperm.slane %v929, %v1112
    %v1243 = vsel %vm1114, %v1242, %v1241
    %v1244 = vperm.slane %v932, %v1116
    %v1245 = vsel %vm1118, %v1244, %v1243
    %v1246 = vperm.slane %v935, %v1106
    %v1247 = vperm.slane %v938, %v1108
    %v1248 = vsel %vm1110, %v1247, %v1246
    %v1249 = vperm.slane %v941, %v1112
    %v1250 = vsel %vm1114, %v1249, %v1248
    %v1251 = vperm.slane %v944, %v1116
    %v1252 = vsel %vm1118, %v1251, %v1250
    %v1253 = vperm.slane %v947, %v1106
    %v1254 = vperm.slane %v950, %v1108
    %v1255 = vsel %vm1110, %v1254, %v1253
    %v1256 = vperm.slane %v953, %v1112
    %v1257 = vsel %vm1114, %v1256, %v1255
    %v1258 = vperm.slane %v956, %v1116
    %v1259 = vsel %vm1118, %v1258, %v1257
    %v1260 = vperm.slane %v959, %v1106
    %v1261 = vperm.slane %v962, %v1108
    %v1262 = vsel %vm1110, %v1261, %v1260
    %v1263 = vperm.slane %v965, %v1112
    %v1264 = vsel %vm1114, %v1263, %v1262
    %v1265 = vperm.slane %v968, %v1116
    %v1266 = vsel %vm1118, %v1265, %v1264
    %v1267 = vperm.slane %v971, %v1106
    %v1268 = vperm.slane %v974, %v1108
    %v1269 = vsel %vm1110, %v1268, %v1267
    %v1270 = vperm.slane %v977, %v1112
    %v1271 = vsel %vm1114, %v1270, %v1269
    %v1272 = vperm.slane %v980, %v1116
    %v1273 = vsel %vm1118, %v1272, %v1271
    %v1274 = vperm.slane %v983, %v1106
    %v1275 = vperm.slane %v986, %v1108
    %v1276 = vsel %vm1110, %v1275, %v1274
    %v1277 = vperm.slane %v989, %v1112
    %v1278 = vsel %vm1114, %v1277, %v1276
    %v1279 = vperm.slane %v992, %v1116
    %v1280 = vsel %vm1118, %v1279, %v1278
    %v1281 = vperm.slane %v995, %v1106
    %v1282 = vperm.slane %v998, %v1108
    %v1283 = vsel %vm1110, %v1282, %v1281
    %v1284 = vperm.slane %v1001, %v1112
    %v1285 = vsel %vm1114, %v1284, %v1283
    %v1286 = vperm.slane %v1004, %v1116
    %v1287 = vsel %vm1118, %v1286, %v1285
    %vm1288 = vcmask 1041409
    %v1289 = vsel %vm1288, %v1126, %v1119
    %vm1290 = vcmask 1042434
    %v1291 = vsel %vm1290, %v1133, %v1289
    %vm1292 = vcmask 1043459
    %v1293 = vsel %vm1292, %v1140, %v1291
    %vm1294 = vcmask 1044484
    %v1295 = vsel %vm1294, %v1147, %v1293
    %vm1296 = vcmask 1045509
    %v1297 = vsel %vm1296, %v1154, %v1295
    %vm1298 = vcmask 1046534
    %v1299 = vsel %vm1298, %v1161, %v1297
    %vm1300 = vcmask 1047559
    %v1301 = vsel %vm1300, %v1168, %v1299
    %v1302 = vsel %vm1288, %v1182, %v1175
    %v1303 = vsel %vm1290, %v1189, %v1302
    %v1304 = vsel %vm1292, %v1196, %v1303
    %v1305 = vsel %vm1294, %v1203, %v1304
    %v1306 = vsel %vm1296, %v1210, %v1305
    %v1307 = vsel %vm1298, %v1217, %v1306
    %v1308 = vsel %vm1300, %v1224, %v1307
    %v1309 = vsel %vm1288, %v1238, %v1231
    %v1310 = vsel %vm1290, %v1245, %v1309
    %v1311 = vsel %vm1292, %v1252, %v1310
    %v1312 = vsel %vm1294, %v1259, %v1311
    %v1313 = vsel %vm1296, %v1266, %v1312
    %v1314 = vsel %vm1298, %v1273, %v1313
    %v1315 = vsel %vm1300, %v1280, %v1314
    %v1320 = vsel %vm704, %v1301, 0.0
    %1321 = vadd.xlane.f32.xlu0 %v1320
    %v1322 = vpop.xlane.xlu0 %1321
    %v1323 = vsel %vm704, %v1308, 0.0
    %1324 = vadd.xlane.f32.xlu0 %v1323
    %v1325 = vpop.xlane.xlu0 %1324
    %v1326 = vsel %vm704, %v1315, 0.0
    %1327 = vadd.xlane.f32.xlu0 %v1326
    %v1328 = vpop.xlane.xlu0 %1327
    %vm1329 = vcmask 253952
    %v1330 = vsel %vm1329, %v1287, 0.0
    %1331 = vadd.xlane.f32.xlu0 %v1330
    %v1332 = vpop.xlane.xlu0 %1331
    %s1333 = smul.f32 %s148, %s148
    %v1334 = vstv %s1333
    %v1335 = vmul.f32 %v1334, %v1322
    %v1336 = vmul.f32 %v1334, %v1325
    %v1337 = vmul.f32 %v1334, %v1328
    %v1338 = vmul.f32 %v1334, %v1332
    %s1339 = ssub.f32 1.0, %s183
    %v1340 = vstv %s1339
    %v1341 = vadd.f32 %v1340, %v1335
    %v1342 = vadd.f32 %v1340, %v1336
    %v1343 = vadd.f32 %v1340, %v1337
    %v1344 = vadd.f32 %v1340, %v1338
    %v1345 = vmax.f32 %v1341, 0.0
    %v1346 = vmax.f32 %v1342, 0.0
    %v1347 = vmax.f32 %v1343, 0.0
    %v1348 = vmax.f32 %v1344, 0.0
    %vm1349 = vcmask 7168
    %v1350 = vsel %vm1349, %v1345, 0.0
    %v1351 = vsel %vm1349, %v1346, 0.0
    %v1352 = vadd.f32 %v1350, %v1351
    %v1353 = vsel %vm1349, %v1347, 0.0
    %v1354 = vadd.f32 %v1352, %v1353
    %vm1355 = vcmask 0
    %v1356 = vsel %vm1355, %v1348, 0.0
    %v1357 = vadd.f32 %v1354, %v1356
    %1358 = vadd.xlane.f32.xlu0 %v1357
    %v1359 = vpop.xlane.xlu0 %1358
    %v1360 = vrot.slane %v1359, 4
    %v1361 = vadd.f32 %v1359, %v1360
    %v1362 = vrot.slane %v1361, 2
    %v1363 = vadd.f32 %v1361, %v1362
    %v1364 = vrot.slane %v1363, 1
    %v1365 = vadd.f32 %v1363, %v1364
    %s1366 = vtos %v1365
    %v1367 = vrcp.pop 25.0
    %v1368 = vmul.f32 25.0, %v1367
    %v1369 = vsub.f32 1.0, %v1368
    %v1370 = vmul.f32 %v1367, %v1369
    %v1371 = vadd.f32 %v1367, %v1370
    %vm1372 = vweird.f32 %v1367
    %v1373 = vsel %vm1372, %v1367, %v1371
    %s1374 = vtos %v1373
    %s1375 = smul.f32 %s1366, %s1374
    %s1376 = scalar_lea.smem [#allocation8], 0
    %1377 = sst [smem:[%s1376]] %s1375
    // Predicated region
    $region26: #{tpu_custom_call.1} parent=1 // pred_check
      _
    $region27: #{tpu_custom_call.1} parent=1 // pred_check_branch
      %1379 = sbr.rel (0) target = $region29
    $region28: #{tpu_custom_call.1} parent=1 // pred_region
      %1381 = vsyncadd [#allocation4], 0
      %s1383 = sshll.u32 %s3, 4
      %s1384 = int_to_ptr.hbm [resolvable:$true] %s1383
      %1386 = dma.smem_to_hbm [#allocation8], 16, %s1384, [#allocation4]
    $region29: #{tpu_custom_call.1} parent=1 // pred_fallthru
      _
    // Predicated region
    $region30: #{tpu_custom_call.1} parent=1 // pred_check
      _
    $region31: #{tpu_custom_call.1} parent=1 // pred_check_branch
      %1388 = sbr.rel (0) target = $region33
    $region32: #{tpu_custom_call.1} parent=1 // pred_region
      %1390 = dma.done [#allocation4], 16
    $region33: #{tpu_custom_call.1} parent=1 // pred_fallthru
      _
    %1391 = sfence
    %1392 = vsyncpa [#allocation3], 1
    %1393 = vsyncpa [#allocation6], 1
    %1394 = vsyncpa [#allocation4], 1

</llo_original>
